<compile_context>
chip_gen: v7x
topology: tpu7x:2x2x1
jax: 0.10.0
libtpu: 0.0.40
codegen_flags: <defaults>
</compile_context>

<pallas_src>
import functools

import jax
import jax.numpy as jnp
from jax.experimental import pallas as pl
from jax.experimental.pallas import tpu as pltpu


_MAX_BLOCK_BYTES = 2 << 20     # per-input-block budget (x2 in/out, x2 dbl-buffer)
_DIRECT_STORE_CHUNKS = 8       # above this many live (bt, L) chunks, store eagerly


# ---------------------------------------------------------------------------
# Helpers
# ---------------------------------------------------------------------------
def _pick_row_block(batch, row_bytes, block_rows=None):
    """Rows per grid step: the whole batch when it fits a small VMEM budget
    (typical inference case -> grid == (1,)); otherwise the largest
    multiple-of-8 row count under the budget, preferring an exact divisor so
    no ragged (masked) final block is generated."""
    if block_rows is not None:
        return max(1, min(block_rows, batch))
    if batch * row_bytes <= _MAX_BLOCK_BYTES:
        return batch
    bt = max(8, (_MAX_BLOCK_BYTES // row_bytes) // 8 * 8)
    bt = min(bt, batch)
    cand = bt
    while cand >= 8:
        if batch % cand == 0:
            return cand
        cand -= 8
    return bt


# ---------------------------------------------------------------------------
# Pallas kernels
# ---------------------------------------------------------------------------
def _rsoftmax_kernel(x_ref, o_ref, *, radix, cardinality, seg):
    """Softmax over the radix groups of a dense (bt, C) block.

    Input lane order : (cardinality, radix, seg)   [PyTorch .view order]
    Output lane order: (radix, cardinality, seg)   [after transpose + reshape]
    The (card, radix) transpose is realised purely as lane placement.
    """
    x = x_ref[...]                                      # (bt, C), native dtype
    nchunks = radix * cardinality
    # Large radix*cardinality: defer-and-concat keeps every chunk live at once
    # (vreg spills with only 64 vregs) -> store each chunk as soon as it is
    # ready.  Small typical case: one dense, lane-aligned row store.
    direct_store = nchunks > _DIRECT_STORE_CHUNKS
    row_chunks = [None] * nchunks

    for c in range(cardinality):
        # Static lane slices in PyTorch view order; xs[r]: (bt, seg).
        xs = [x[:, (c * radix + r) * seg:(c * radix + r + 1) * seg]
              for r in range(radix)]
        # Unrolled VPU max tree (input dtype: bf16 VPU on v6e/v7x, f32 on v5e).
        m = xs[0]
        for r in range(1, radix):
            m = jnp.maximum(m, xs[r])
        # exp on the EUP in f32.
        es = [jnp.exp((xs[r] - m).astype(jnp.float32)) for r in range(radix)]
        s = es[0]
        for r in range(1, radix):
            s = s + es[r]
        # Exact EUP reciprocal -> parity with jax.nn.softmax to ~1e-6.
        inv = pl.reciprocal(s, approx=False)
        for r in range(radix):
            chunk = (es[r] * inv).astype(o_ref.dtype)
            j = r * cardinality + c                     # transposed lane slot
            if direct_store:
                o_ref[:, j * seg:(j + 1) * seg] = chunk
            else:
                row_chunks[j] = chunk

    if not direct_store:
        out = row_chunks[0] if nchunks == 1 else jnp.concatenate(row_chunks, axis=1)
        o_ref[...] = out


def _sigmoid_kernel(x_ref, o_ref):
    """Elementwise sigmoid for the radix == 1 branch (dense (bt, N) block)."""
    x = x_ref[...].astype(jnp.float32)
    o_ref[...] = jax.nn.sigmoid(x).astype(o_ref.dtype)


# ---------------------------------------------------------------------------
# Wrapper: matches rSoftMax.forward
# ---------------------------------------------------------------------------
def rsoftmax(x, *, radix, cardinality, block_rows=None):
    """x: (B, C, H, W) NCHW, same as the PyTorch module input."""
    batch = x.shape[0]
    n = 1
    for d in x.shape[1:]:
        n *= d
    itemsize = jnp.dtype(x.dtype).itemsize
    bt = _pick_row_block(batch, n * itemsize, block_rows)
    grid = (pl.cdiv(batch, bt),)
    x2 = x.reshape(batch, n)                            # free reshape, no transpose

    if radix > 1:
        assert n % (radix * cardinality) == 0, "C*H*W must equal card*radix*L"
        seg = n // (radix * cardinality)
        kern = functools.partial(
            _rsoftmax_kernel, radix=radix, cardinality=cardinality, seg=seg)
        cost = pl.CostEstimate(
            flops=4 * batch * n,
            transcendentals=batch * n + batch * (n // radix),
            bytes_accessed=2 * batch * n * itemsize)
        out = pl.pallas_call(
            kern,
            out_shape=jax.ShapeDtypeStruct((batch, n), x.dtype),
            grid=grid,
            in_specs=[pl.BlockSpec((bt, n), lambda i: (i, 0))],
            out_specs=pl.BlockSpec((bt, n), lambda i: (i, 0)),
            compiler_params=pltpu.CompilerParams(
                dimension_semantics=("parallel",)),
            cost_estimate=cost,
        )(x2)
        # Lane order already equals torch's transpose(1,2).reshape(B, -1).
        return out
    else:
        cost = pl.CostEstimate(
            flops=2 * batch * n,
            transcendentals=batch * n,
            bytes_accessed=2 * batch * n * itemsize)
        out = pl.pallas_call(
            _sigmoid_kernel,
            out_shape=jax.ShapeDtypeStruct((batch, n), x.dtype),
            grid=grid,
            in_specs=[pl.BlockSpec((bt, n), lambda i: (i, 0))],
            out_specs=pl.BlockSpec((bt, n), lambda i: (i, 0)),
            compiler_params=pltpu.CompilerParams(
                dimension_semantics=("parallel",)),
            cost_estimate=cost,
        )(x2)
        return out.reshape(x.shape)


# ---------------------------------------------------------------------------
# Pure-JAX reference (mirrors the PyTorch code exactly)
# ---------------------------------------------------------------------------
def rsoftmax_ref(x, *, radix, cardinality):
    batch = x.shape[0]
    if radix > 1:
        x4 = x.reshape(batch, cardinality, radix, -1)
        x4 = jnp.transpose(x4, (0, 2, 1, 3))
        x4 = jax.nn.softmax(x4, axis=1)
        return x4.reshape(batch, -1)
    return jax.nn.sigmoid(x)


if __name__ == "__main__":
    key = jax.random.PRNGKey(0)
    k1, k2, k3 = jax.random.split(key, 3)

    # ---- radix > 1, typical tiny inference shape: single grid step ----
    batch, radix, cardinality = 2, 4, 2
    L = 32
    C = cardinality * radix * L                         # 256 -> lane-dense output
    x = jax.random.normal(k1, (batch, C, 1, 1), dtype=jnp.float32)

    fn = functools.partial(rsoftmax, radix=radix, cardinality=cardinality)
    out = jax.block_until_ready(fn(x))
    ref = rsoftmax_ref(x, radix=radix, cardinality=cardinality)
    assert out.shape == (batch, C), out.shape
    assert jnp.allclose(out, ref, atol=1e-5, rtol=1e-5), "softmax branch mismatch"

    # ---- radix > 1, forced multi-block grid (exercises row blocking path) ----
    xb = jax.random.normal(k3, (64, C, 1, 1), dtype=jnp.float32)
    outb = jax.block_until_ready(
        rsoftmax(xb, radix=radix, cardinality=cardinality, block_rows=16))
    refb = rsoftmax_ref(xb, radix=radix, cardinality=cardinality)
    assert outb.shape == (64, C), outb.shape
    assert jnp.allclose(outb, refb, atol=1e-5, rtol=1e-5), "blocked softmax mismatch"

    # ---- radix == 1 path (sigmoid, shape preserved, lane-dense 128 channels) ----
    x1 = jax.random.normal(k2, (2, 128, 1, 1), dtype=jnp.float32)
    out1 = jax.block_until_ready(rsoftmax(x1, radix=1, cardinality=cardinality))
    ref1 = rsoftmax_ref(x1, radix=1, cardinality=cardinality)
    assert out1.shape == x1.shape
    assert jnp.allclose(out1, ref1, atol=1e-5, rtol=1e-5), "sigmoid branch mismatch"

    print("KERNEL_OK")
</pallas_src>

<mosaic_0001>
module attributes {stable_mosaic.version = 11 : i64} {
  func.func @_rsoftmax_kernel(%arg0: i32, %arg1: memref<2x256xf32, #tpu.memory_space<vmem>>, %arg2: memref<2x256xf32, #tpu.memory_space<vmem>>) attributes {dimension_semantics = [#tpu.dimension_semantics<parallel>], iteration_bounds = array<i64: 1>, scalar_prefetch = 0 : i64, scratch_operands = 0 : i64, tpu.core_type = #tpu.core_type<tc>, window_params = [{transform_indices = @transform_0, window_bounds = array<i64: 2, 256>}, {transform_indices = @transform_1, window_bounds = array<i64: 2, 256>}]} {
    %c0 = arith.constant 0 : index
    %c0_0 = arith.constant 0 : index
    %0 = vector.load %arg1[%c0, %c0_0] : memref<2x256xf32, #tpu.memory_space<vmem>>, vector<2x256xf32>
    %1 = vector.extract_strided_slice %0 {offsets = [0, 0], sizes = [2, 32], strides = [1, 1]} : vector<2x256xf32> to vector<2x32xf32>
    %2 = vector.extract_strided_slice %0 {offsets = [0, 32], sizes = [2, 32], strides = [1, 1]} : vector<2x256xf32> to vector<2x32xf32>
    %3 = vector.extract_strided_slice %0 {offsets = [0, 64], sizes = [2, 32], strides = [1, 1]} : vector<2x256xf32> to vector<2x32xf32>
    %4 = vector.extract_strided_slice %0 {offsets = [0, 96], sizes = [2, 32], strides = [1, 1]} : vector<2x256xf32> to vector<2x32xf32>
    %5 = arith.maximumf %1, %2 : vector<2x32xf32>
    %6 = arith.maximumf %5, %3 : vector<2x32xf32>
    %7 = arith.maximumf %6, %4 : vector<2x32xf32>
    %8 = arith.subf %1, %7 : vector<2x32xf32>
    %9 = math.exp %8 : vector<2x32xf32>
    %10 = arith.subf %2, %7 : vector<2x32xf32>
    %11 = math.exp %10 : vector<2x32xf32>
    %12 = arith.subf %3, %7 : vector<2x32xf32>
    %13 = math.exp %12 : vector<2x32xf32>
    %14 = arith.subf %4, %7 : vector<2x32xf32>
    %15 = math.exp %14 : vector<2x32xf32>
    %16 = arith.addf %9, %11 : vector<2x32xf32>
    %17 = arith.addf %16, %13 : vector<2x32xf32>
    %18 = arith.addf %17, %15 : vector<2x32xf32>
    %19 = tpu.reciprocal %18 : vector<2x32xf32> -> vector<2x32xf32>
    %20 = arith.mulf %9, %19 : vector<2x32xf32>
    %21 = arith.mulf %11, %19 : vector<2x32xf32>
    %22 = arith.mulf %13, %19 : vector<2x32xf32>
    %23 = arith.mulf %15, %19 : vector<2x32xf32>
    %24 = vector.extract_strided_slice %0 {offsets = [0, 128], sizes = [2, 32], strides = [1, 1]} : vector<2x256xf32> to vector<2x32xf32>
    %25 = vector.extract_strided_slice %0 {offsets = [0, 160], sizes = [2, 32], strides = [1, 1]} : vector<2x256xf32> to vector<2x32xf32>
    %26 = vector.extract_strided_slice %0 {offsets = [0, 192], sizes = [2, 32], strides = [1, 1]} : vector<2x256xf32> to vector<2x32xf32>
    %27 = vector.extract_strided_slice %0 {offsets = [0, 224], sizes = [2, 32], strides = [1, 1]} : vector<2x256xf32> to vector<2x32xf32>
    %28 = arith.maximumf %24, %25 : vector<2x32xf32>
    %29 = arith.maximumf %28, %26 : vector<2x32xf32>
    %30 = arith.maximumf %29, %27 : vector<2x32xf32>
    %31 = arith.subf %24, %30 : vector<2x32xf32>
    %32 = math.exp %31 : vector<2x32xf32>
    %33 = arith.subf %25, %30 : vector<2x32xf32>
    %34 = math.exp %33 : vector<2x32xf32>
    %35 = arith.subf %26, %30 : vector<2x32xf32>
    %36 = math.exp %35 : vector<2x32xf32>
    %37 = arith.subf %27, %30 : vector<2x32xf32>
    %38 = math.exp %37 : vector<2x32xf32>
    %39 = arith.addf %32, %34 : vector<2x32xf32>
    %40 = arith.addf %39, %36 : vector<2x32xf32>
    %41 = arith.addf %40, %38 : vector<2x32xf32>
    %42 = tpu.reciprocal %41 : vector<2x32xf32> -> vector<2x32xf32>
    %43 = arith.mulf %32, %42 : vector<2x32xf32>
    %44 = arith.mulf %34, %42 : vector<2x32xf32>
    %45 = arith.mulf %36, %42 : vector<2x32xf32>
    %46 = arith.mulf %38, %42 : vector<2x32xf32>
    %47 = tpu.concatenate %20, %43, %21, %44, %22, %45, %23, %46 in 1 : vector<2x32xf32>, vector<2x32xf32>, vector<2x32xf32>, vector<2x32xf32>, vector<2x32xf32>, vector<2x32xf32>, vector<2x32xf32>, vector<2x32xf32> -> vector<2x256xf32>
    %c0_1 = arith.constant 0 : index
    %c0_2 = arith.constant 0 : index
    %48 = vector.load %arg2[%c0_1, %c0_2] : memref<2x256xf32, #tpu.memory_space<vmem>>, vector<2x256xf32>
    tpu.vector_store %arg2[%c0_1, %c0_2], %47 {strides = array<i32>} : memref<2x256xf32, #tpu.memory_space<vmem>>, vector<2x256xf32>,
    return
  }
  func.func @transform_0(%arg0: i32) -> (i32, i32) {
    %c0_i32 = arith.constant 0 : i32
    %c0_i32_0 = arith.constant 0 : i32
    return %arg0, %c0_i32 : i32, i32
  }
  func.func @transform_1(%arg0: i32) -> (i32, i32) {
    %c0_i32 = arith.constant 0 : i32
    %c0_i32_0 = arith.constant 0 : i32
    return %arg0, %c0_i32 : i32, i32
  }
}

</mosaic_0001>

<llo_original>
// kernel: tpu_custom_call.1
$region0: #{tpu_custom_call.1}
  #allocation0 [shape = 'u32[]', space=smem, size = 0x4, offset = 0x4, fixed_abs, tag = 'smem constant byte address 0x4 - core index']
  #allocation1 [shape = 'u32[144,128]{1,0:T(1,128)}', space=vmem, size = 0x12000, scoped, tag = 'internal scratch']
  %s0 = inlined_call_operand.hbm [shape: f32[2,256], index: 0, kind: input, shape index: {}]
  %s1 = inlined_call_operand.hbm [shape: f32[2,256], index: 1, kind: output, shape index: {}]
  %s2 = sld [smem:[#allocation0]]
  $region18: #{tpu_custom_call.1} parent=0
    _
  %s4 = ssub.s32 1, %s2
  %s5 = scalar_select 0, %s4, %s2
  $region1: #{tpu_custom_call.1} parent=0
    #allocation2 [shape = 'u8[2048]{0}', space=vmem, size = 0x800, scoped, tag = 'input window, operand 0, single buffered']
    #allocation3 [shape = 's32[1]{0}', space=sflag, size = 0x4, scoped, tag = 'scoped memory for tpu_custom_call.1']
    #allocation4 [shape = 's32[1]{0}', space=sflag, size = 0x4, scoped, tag = 'scoped memory for tpu_custom_call.1']
    #allocation5 [shape = 'u8[2048]{0}', space=vmem, size = 0x800, scoped, tag = 'output window, operand 0, single buffered']
    %6 = vsyncpa [#allocation3], 0
    %7 = vsyncpa [#allocation4], 0
    // Predicated region
    $region2: #{tpu_custom_call.1} parent=1 // pred_check
      _
    $region3: #{tpu_custom_call.1} parent=1 // pred_check_branch
      %9 = sbr.rel (0) target = $region5
    $region4: #{tpu_custom_call.1} parent=1 // pred_region
      %s11 = ssub.s32 64, 64
      %12 = vsyncadd [#allocation3], %s11
      %s14 = sshll.u32 [#allocation2], 4
      %s15 = int_to_ptr.vmem [resolvable:$true] %s14
      %17 = dma.hbm_to_vmem [thread:$0]  %s0, 64, %s15, [#allocation3]
    $region5: #{tpu_custom_call.1} parent=1 // pred_fallthru
      _
    // Predicated region
    $region6: #{tpu_custom_call.1} parent=1 // pred_check
      _
    $region7: #{tpu_custom_call.1} parent=1 // pred_check_branch
      %19 = sbr.rel (0) target = $region9
    $region8: #{tpu_custom_call.1} parent=1 // pred_region
      %20 = dma.done [#allocation3], 64
    $region9: #{tpu_custom_call.1} parent=1 // pred_fallthru
      _
    %v21 = vld [vmem:[#allocation2] sm:$0xf]
    %23 = vrot.lane.b32.xlu0 %v21, 96
    %v24 = vpop.permute.xlu0 %23
    %v26 = vmax.f32 %v21, %v24
    %27 = vrot.lane.b32.xlu0 %v21, 64
    %v28 = vpop.permute.xlu0 %27
    %v30 = vmax.f32 %v26, %v28
    %31 = vrot.lane.b32.xlu0 %v21, 32
    %v32 = vpop.permute.xlu0 %31
    %v34 = vmax.f32 %v30, %v32
    %v35 = vsub.f32 %v21, %v34
    %v36 = vmul.f32 %v35, 1.442695
    %v37 = vpow.pop %v36
    %39 = vrot.lane.b32.xlu0 %v34, 32
    %v40 = vpop.permute.xlu0 %39
    %v42 = vsub.f32 %v21, %v40
    %v43 = vmul.f32 %v42, 1.442695
    %v44 = vpow.pop %v43
    %45 = vrot.lane.b32.xlu0 %v34, 64
    %v46 = vpop.permute.xlu0 %45
    %v48 = vsub.f32 %v21, %v46
    %v49 = vmul.f32 %v48, 1.442695
    %v50 = vpow.pop %v49
    %51 = vrot.lane.b32.xlu0 %v34, 96
    %v52 = vpop.permute.xlu0 %51
    %v54 = vsub.f32 %v21, %v52
    %v55 = vmul.f32 %v54, 1.442695
    %v56 = vpow.pop %v55
    %58 = vrot.lane.b32.xlu0 %v44, 96
    %v59 = vpop.permute.xlu0 %58
    %v61 = vadd.f32 %v37, %v59
    %63 = vrot.lane.b32.xlu0 %v50, 64
    %v64 = vpop.permute.xlu0 %63
    %v66 = vadd.f32 %v61, %v64
    %68 = vrot.lane.b32.xlu0 %v56, 32
    %v69 = vpop.permute.xlu0 %68
    %v71 = vadd.f32 %v66, %v69
    %v72 = vrcp.pop %v71
    %v73 = vmul.f32 %v37, %v72
    %75 = vrot.lane.b32.xlu0 %v72, 32
    %v76 = vpop.permute.xlu0 %75
    %v78 = vmul.f32 %v44, %v76
    %79 = vrot.lane.b32.xlu0 %v72, 64
    %v80 = vpop.permute.xlu0 %79
    %v82 = vmul.f32 %v50, %v80
    %83 = vrot.lane.b32.xlu0 %v72, 96
    %v84 = vpop.permute.xlu0 %83
    %v86 = vmul.f32 %v56, %v84
    %v87 = vrot.slane %v21, 2
    %v89 = vrot.slane %v24, 2
    %v91 = vmax.f32 %v87, %v89
    %v92 = vrot.slane %v28, 2
    %v94 = vmax.f32 %v91, %v92
    %v95 = vrot.slane %v32, 2
    %v97 = vmax.f32 %v94, %v95
    %v98 = vsub.f32 %v87, %v97
    %v99 = vmul.f32 %v98, 1.442695
    %v100 = vpow.pop %v99
    %v101 = vsub.f32 %v89, %v97
    %v102 = vmul.f32 %v101, 1.442695
    %v103 = vpow.pop %v102
    %v104 = vsub.f32 %v92, %v97
    %v105 = vmul.f32 %v104, 1.442695
    %v106 = vpow.pop %v105
    %v107 = vsub.f32 %v95, %v97
    %v108 = vmul.f32 %v107, 1.442695
    %v109 = vpow.pop %v108
    %v110 = vadd.f32 %v100, %v103
    %v111 = vadd.f32 %v110, %v106
    %v112 = vadd.f32 %v111, %v109
    %v113 = vrcp.pop %v112
    %v114 = vmul.f32 %v100, %v113
    %v115 = vmul.f32 %v103, %v113
    %v116 = vmul.f32 %v106, %v113
    %v117 = vmul.f32 %v109, %v113
    %v120 = vunpack.c.l.s4 1983009808
    %v121 = vunpack.c.0.s8 %v120
    %v122 = vlaneseq
    %v123 = vshrl.u32 %v122, 7
    %v124 = vsub.s32 %v121, %v123
    %v125 = vrot.slane %v114, %v124
    %126 = vrot.lane.b32.xlu0 %v125, 32
    %v127 = vpop.permute.xlu0 %126
    %v131 = vunpack.c.l.s4 1983009808
    %v132 = vunpack.c.0.s8 %v131
    %v133 = vlaneseq
    %v134 = vshrl.u32 %v133, 7
    %v135 = vsub.s32 %v132, %v134
    %v136 = vrot.slane %v78, %v135
    %137 = vrot.lane.b32.xlu0 %v136, 32
    %v138 = vpop.permute.xlu0 %137
    %v142 = vunpack.c.l.s4 1983009808
    %v143 = vunpack.c.0.s8 %v142
    %v144 = vlaneseq
    %v145 = vshrl.u32 %v144, 7
    %v146 = vsub.s32 %v143, %v145
    %v147 = vrot.slane %v115, %v146
    %148 = vrot.lane.b32.xlu0 %v147, 96
    %v149 = vpop.permute.xlu0 %148
    %v153 = vunpack.c.l.s4 1983009808
    %v154 = vunpack.c.0.s8 %v153
    %v155 = vlaneseq
    %v156 = vshrl.u32 %v155, 7
    %v157 = vsub.s32 %v154, %v156
    %v158 = vrot.slane %v82, %v157
    %159 = vrot.lane.b32.xlu0 %v158, 64
    %v160 = vpop.permute.xlu0 %159
    %v164 = vunpack.c.l.s4 1983009808
    %v165 = vunpack.c.0.s8 %v164
    %v166 = vlaneseq
    %v167 = vshrl.u32 %v166, 7
    %v168 = vsub.s32 %v165, %v167
    %v169 = vrot.slane %v116, %v168
    %170 = vrot.lane.b32.xlu0 %v169, 32
    %v171 = vpop.permute.xlu0 %170
    %v175 = vunpack.c.l.s4 1983009808
    %v176 = vunpack.c.0.s8 %v175
    %v177 = vlaneseq
    %v178 = vshrl.u32 %v177, 7
    %v179 = vsub.s32 %v176, %v178
    %v180 = vrot.slane %v86, %v179
    %181 = vrot.lane.b32.xlu0 %v180, 96
    %v182 = vpop.permute.xlu0 %181
    %v186 = vunpack.c.l.s4 1983009808
    %v187 = vunpack.c.0.s8 %v186
    %v188 = vlaneseq
    %v189 = vshrl.u32 %v188, 7
    %v190 = vsub.s32 %v187, %v189
    %v191 = vrot.slane %v117, %v190
    %192 = vrot.lane.b32.xlu0 %v191, 96
    %v193 = vpop.permute.xlu0 %192
    %vm195 = vcmask 261120
    %v196 = vsel %vm195, %v73, %v127
    %vm197 = vcmask 523264
    %v198 = vsel %vm197, %v196, %v138
    %vm199 = vcmask 785408
    %v200 = vsel %vm199, %v198, %v149
    %v201 = vsel %vm195, %v160, %v171
    %v202 = vsel %vm197, %v201, %v182
    %v203 = vsel %vm199, %v202, %v193
    %v206 = vcombine.low %v200, %v203
    %v208 = vunpack.c.l.s4 1983009808
    %v209 = vunpack.c.0.s8 %v208
    %v210 = vlaneseq
    %v211 = vshrl.u32 %v210, 7
    %v212 = vsub.s32 %v209, %v211
    %v213 = vrot.slane %v206, %v212
    %215 = vst [vmem:[#allocation5] sm:$0xf] %v213
    // Predicated region
    $region10: #{tpu_custom_call.1} parent=1 // pred_check
      _
    $region11: #{tpu_custom_call.1} parent=1 // pred_check_branch
      %217 = sbr.rel (0) target = $region13
    $region12: #{tpu_custom_call.1} parent=1 // pred_region
      %s219 = ssub.s32 64, 64
      %220 = vsyncadd [#allocation4], %s219
      %s222 = sshll.u32 [#allocation5], 4
      %s223 = int_to_ptr.vmem [resolvable:$true] %s222
      %225 = dma.vmem_to_hbm [thread:$0]  %s223, 64, %s1, [#allocation4]
    $region13: #{tpu_custom_call.1} parent=1 // pred_fallthru
      _
    // Predicated region
    $region14: #{tpu_custom_call.1} parent=1 // pred_check
      _
    $region15: #{tpu_custom_call.1} parent=1 // pred_check_branch
      %227 = sbr.rel (0) target = $region17
    $region16: #{tpu_custom_call.1} parent=1 // pred_region
      %228 = dma.done [#allocation4], 64
    $region17: #{tpu_custom_call.1} parent=1 // pred_fallthru
      _
    %229 = vsyncpa [#allocation3], 1
    %230 = vsyncpa [#allocation4], 1

</llo_original>
